<compile_context>
chip_gen: v7x
topology: tpu7x:2x2x1
jax: 0.10.0
libtpu: 0.0.40
codegen_flags: <defaults>
</compile_context>

<pallas_src>
import functools

import jax
import jax.numpy as jnp
from jax.experimental import pallas as pl
from jax.experimental.pallas import tpu as pltpu

NUM_SLOTS = 256
NOISE_DIM = 2048  # the original module hard-codes size-(2048,) noise vectors
SIGMA1 = 0.1
SIGMA2 = 0.1


def _simplefa_kernel(slot_ref, x_ref, tab_ref, o_ref, *, compute_dtype):
    # slot_ref: (Bblk, 1, T)   int32 slot ids for this pixel tile
    # x_ref   : (Bblk, C, T)   features; channels on sublanes, pixels on lanes
    # tab_ref : (2C, 256)      bf16 noise table; rows [0:C] = alpha.T, rows [C:2C] = beta.T
    # o_ref   : (Bblk, C, T)
    bblk, C, T = x_ref.shape
    tab = tab_ref[...]
    iota = jax.lax.broadcasted_iota(jnp.int32, (NUM_SLOTS, T), 0)
    for bi in range(bblk):  # static unroll; bblk is capped small (<= 8)
        slots = slot_ref[bi]                                  # (1, T)
        onehot = (iota == slots).astype(jnp.bfloat16)         # (256, T); exact in bf16
        # Single fused MXU gather of alpha AND beta columns (exact selection).
        ab = jnp.dot(tab, onehot, preferred_element_type=compute_dtype)  # (2C, T)
        a = ab[:C]
        b = ab[C:]
        xb = x_ref[bi].astype(compute_dtype)
        o_ref[bi] = (a * xb + b).astype(o_ref.dtype)


def _vmem_capacity_bytes():
    try:
        return int(pltpu.get_tpu_info().vmem_capacity_bytes)
    except Exception:
        pass
    try:
        if "v7" in jax.devices()[0].device_kind.lower():
            return 64 << 20
    except Exception:
        pass
    return 128 << 20


def _compute_dtype_for(x_dtype):
    if jnp.dtype(x_dtype) != jnp.dtype(jnp.bfloat16):
        return jnp.float32
    try:
        kind = jax.devices()[0].device_kind.lower()
    except Exception:
        kind = ""
    # v5e has no bf16 VALU/EUP -> keep the affine in f32 there.
    return jnp.float32 if "v5" in kind else jnp.bfloat16


def simple_fa_apply(x_nchw, slot_assign, alpha, beta, *, tile_hw=None):
    """x_nchw: (B,C,H,W); slot_assign: (B,H,W) ints in [0, 256).
    alpha, beta: (NUM_SLOTS, NOISE_DIM) f32 (first C columns used; the original
    module assumes C == 2048)."""
    B, C, H, W = x_nchw.shape
    if C > alpha.shape[1]:
        raise ValueError("channel dim exceeds noise-vector length")
    HW = H * W
    itemsize = jnp.dtype(x_nchw.dtype).itemsize

    # Native-layout views (free reshapes: NCHW is contiguous over H*W).
    x_slab = x_nchw.reshape(B, C, HW)
    slots = slot_assign.reshape(B, 1, HW).astype(jnp.int32)

    # One-time tiny (<= ~1 MiB) fused bf16 table: rows [0:C]=alpha.T, [C:2C]=beta.T.
    tab = jnp.concatenate([alpha[:, :C].T, beta[:, :C].T], axis=0).astype(jnp.bfloat16)

    # --- generation-aware VMEM budget --------------------------------------
    cap = _vmem_capacity_bytes()
    if cap <= (64 << 20):        # v7x-class: 64 MiB per TensorCore
        shrink_threshold, limit_cap, default_tile = 30 << 20, 52 << 20, 1024
    else:                        # 128 MiB parts (v5e / v6e)
        shrink_threshold, limit_cap, default_tile = 88 << 20, 100 << 20, 2048

    compute_dtype = _compute_dtype_for(x_slab.dtype)
    acc_itemsize = jnp.dtype(compute_dtype).itemsize

    def vmem_needed(tile, bblk=1):
        blocks = 2 * 2 * bblk * C * tile * itemsize          # x + out blocks (double-buffered)
        blocks += 2 * bblk * tile * 4                        # slot-id blocks
        tables = 2 * (2 * C) * NUM_SLOTS * 2                 # bf16 table (double-buffered)
        # in-kernel temporaries: (2C,T) gather result + cast/affine + one-hot
        temps = bblk * (3 * C * tile * acc_itemsize + NUM_SLOTS * tile * 2)
        return blocks + tables + temps

    # --- tile selection -----------------------------------------------------
    tile_hw = default_tile if tile_hw is None else int(tile_hw)
    tile_hw = max(128, (tile_hw // 128) * 128)
    while tile_hw > 128 and vmem_needed(tile_hw) > shrink_threshold:
        tile_hw -= 128

    if HW <= tile_hw:
        tile = HW  # one block covers the whole image (full-dim block, no (8,128) issue)
        # Small feature maps: pack several images per grid step to amortize the
        # per-step overhead and keep DMAs large (static unroll, capped at 8).
        bytes_per_img = max(1, C * HW * itemsize)
        bblk = int(min(B, 8, max(1, (2 << 20) // bytes_per_img)))
    else:
        tile = tile_hw
        bblk = 1

    need = vmem_needed(tile, bblk)
    vmem_limit = int(max(min(need + (8 << 20), limit_cap), 16 << 20))

    grid = (pl.cdiv(B, bblk), pl.cdiv(HW, tile))  # ragged last blocks handled by Pallas

    cost = pl.CostEstimate(
        flops=2 * (2 * C) * NUM_SLOTS * B * HW + 2 * B * C * HW,   # fused gather + affine
        transcendentals=0,
        bytes_accessed=2 * B * C * HW * itemsize                    # x read + out write
        + B * HW * 4                                                # slot ids
        + 2 * C * NUM_SLOTS * 2,                                    # bf16 table
    )

    kernel = functools.partial(_simplefa_kernel, compute_dtype=compute_dtype)

    out = pl.pallas_call(
        kernel,
        out_shape=jax.ShapeDtypeStruct((B, C, HW), x_slab.dtype),
        grid_spec=pltpu.PrefetchScalarGridSpec(
            num_scalar_prefetch=0,
            grid=grid,
            in_specs=[
                pl.BlockSpec((bblk, 1, tile), lambda bi, j: (bi, 0, j)),
                pl.BlockSpec((bblk, C, tile), lambda bi, j: (bi, 0, j)),
                # Constant index_map -> Pallas DMAs the table only once.
                # (Could be single-buffered via pipeline_mode=pl.Buffered(1) to save
                #  ~1 MiB at C=2048; left at the default for robustness.)
                pl.BlockSpec((2 * C, NUM_SLOTS), lambda bi, j: (0, 0)),
            ],
            out_specs=pl.BlockSpec((bblk, C, tile), lambda bi, j: (bi, 0, j)),
        ),
        compiler_params=pltpu.CompilerParams(
            dimension_semantics=("parallel", "parallel"),
            vmem_limit_bytes=vmem_limit,
        ),
        cost_estimate=cost,
    )(slots, x_slab, tab)

    return out.reshape(B, C, H, W)  # free reshape; already NCHW


def generate_slot_noises(key, sigma1=SIGMA1, sigma2=SIGMA2):
    """alpha ~ N(1, sigma1), beta ~ N(0, sigma2), one row per slot (0..255)."""
    ka, kb = jax.random.split(key)
    alpha = 1.0 + sigma1 * jax.random.normal(ka, (NUM_SLOTS, NOISE_DIM), jnp.float32)
    beta = sigma2 * jax.random.normal(kb, (NUM_SLOTS, NOISE_DIM), jnp.float32)
    # sync_across_gpus: dist.broadcast(src=0) is an identity on a single device.
    return alpha, beta


def simple_fa_forward(x, slot_assign, key, sigma1=SIGMA1, sigma2=SIGMA2):
    """Mirrors SimpleFA.forward: fresh noise per call, then the fused affine."""
    alpha, beta = generate_slot_noises(key, sigma1, sigma2)
    return simple_fa_apply(x, slot_assign, alpha, beta)


def _reference(x, slot_assign, alpha, beta):
    # Pure-JAX reference against the same bf16-rounded tables the kernel consumes
    # (the one-hot MXU gather itself is exact).
    C = x.shape[1]
    a_bf = alpha[:, :C].astype(jnp.bfloat16).astype(jnp.float32)
    b_bf = beta[:, :C].astype(jnp.bfloat16).astype(jnp.float32)
    a_g = a_bf[slot_assign]  # (B,H,W,C)
    b_g = b_bf[slot_assign]
    x_bhwc = jnp.transpose(x, (0, 2, 3, 1))
    return jnp.transpose(a_g * x_bhwc + b_g, (0, 3, 1, 2))


if __name__ == "__main__":
    key = jax.random.PRNGKey(0)
    k_x, k_slot, k_noise, k_x2, k_slot2 = jax.random.split(key, 5)

    alpha, beta = generate_slot_noises(k_noise)

    # --- test 1: small NCHW map; exercises the batch-packed (bblk > 1) path ---
    B, C, H, W = 2, 8, 16, 16
    x = jax.random.normal(k_x, (B, C, H, W), jnp.float32)
    slot_assign = jax.random.randint(k_slot, (B, H, W), 0, NUM_SLOTS, jnp.int32)

    out = jax.block_until_ready(simple_fa_apply(x, slot_assign, alpha, beta))
    ref = _reference(x, slot_assign, alpha, beta)
    assert out.shape == x.shape and out.dtype == x.dtype
    assert jnp.allclose(out, ref, atol=1e-5, rtol=1e-5)

    # --- test 2: non-divisible HW with a forced small tile; exercises ragged
    # edge blocks (no pad / slice round trips) -------------------------------
    B2, C2, H2, W2 = 3, 8, 13, 13
    x2 = jax.random.normal(k_x2, (B2, C2, H2, W2), jnp.float32)
    slot2 = jax.random.randint(k_slot2, (B2, H2, W2), 0, NUM_SLOTS, jnp.int32)
    out2 = jax.block_until_ready(simple_fa_apply(x2, slot2, alpha, beta, tile_hw=128))
    ref2 = _reference(x2, slot2, alpha, beta)
    assert out2.shape == x2.shape and jnp.allclose(out2, ref2, atol=1e-5, rtol=1e-5)

    # forward (fresh noise) also runs end to end
    _ = jax.block_until_ready(simple_fa_forward(x, slot_assign, jax.random.PRNGKey(1)))

    print("KERNEL_OK")
</pallas_src>

<mosaic_0001>
module attributes {stable_mosaic.version = 11 : i64} {
  func.func @_simplefa_kernel(%arg0: i32, %arg1: i32, %arg2: memref<2x1x256xi32, #tpu.memory_space<vmem>>, %arg3: memref<2x8x256xf32, #tpu.memory_space<vmem>>, %arg4: memref<16x256xbf16, #tpu.memory_space<vmem>>, %arg5: memref<2x8x256xf32, #tpu.memory_space<vmem>>) attributes {dimension_semantics = [#tpu.dimension_semantics<parallel>, #tpu.dimension_semantics<parallel>], iteration_bounds = array<i64: 1, 1>, scalar_prefetch = 0 : i64, scratch_operands = 0 : i64, tpu.core_type = #tpu.core_type<tc>, window_params = [{transform_indices = @transform_0, window_bounds = array<i64: 2, 1, 256>}, {transform_indices = @transform_1, window_bounds = array<i64: 2, 8, 256>}, {pipeline_mode = #tpu.pipeline_mode<synchronous>, transform_indices = @transform_2, window_bounds = array<i64: 16, 256>}, {transform_indices = @transform_3, window_bounds = array<i64: 2, 8, 256>}]} {
    %c0 = arith.constant 0 : index
    %c0_0 = arith.constant 0 : index
    %0 = vector.load %arg4[%c0, %c0_0] : memref<16x256xbf16, #tpu.memory_space<vmem>>, vector<16x256xbf16>
    %1 = tpu.iota {dimensions = array<i32: 0>} : vector<256x256xi32>
    %c0_1 = arith.constant 0 : index
    %c0_2 = arith.constant 0 : index
    %c0_3 = arith.constant 0 : index
    %2 = vector.load %arg2[%c0_1, %c0_2, %c0_3] : memref<2x1x256xi32, #tpu.memory_space<vmem>>, vector<1x1x256xi32>
    %3 = vector.shape_cast %2 : vector<1x1x256xi32> to vector<1x256xi32>
    %4 = vector.broadcast %3 : vector<1x256xi32> to vector<256x256xi32>
    %5 = arith.cmpi eq, %1, %4 : vector<256x256xi32>
    %6 = arith.extui %5 : vector<256x256xi1> to vector<256x256xi32>
    %7 = arith.sitofp %6 : vector<256x256xi32> to vector<256x256xf32>
    %8 = arith.truncf %7 : vector<256x256xf32> to vector<256x256xbf16>
    %cst = arith.constant dense<0.000000e+00> : vector<16x256xf32>
    %9 = tpu.matmul %0, %8, %cst {dimension_numbers = #tpu.dot_dimension_numbers<[1], [0], [0], [1], [0, 0, 1, 1], [], []>} : vector<16x256xbf16>, vector<256x256xbf16>, vector<16x256xf32> -> vector<16x256xf32>
    %10 = vector.extract_strided_slice %9 {offsets = [0, 0], sizes = [8, 256], strides = [1, 1]} : vector<16x256xf32> to vector<8x256xf32>
    %11 = vector.extract_strided_slice %9 {offsets = [8, 0], sizes = [8, 256], strides = [1, 1]} : vector<16x256xf32> to vector<8x256xf32>
    %c0_4 = arith.constant 0 : index
    %c0_5 = arith.constant 0 : index
    %c0_6 = arith.constant 0 : index
    %12 = vector.load %arg3[%c0_4, %c0_5, %c0_6] : memref<2x8x256xf32, #tpu.memory_space<vmem>>, vector<1x8x256xf32>
    %13 = vector.shape_cast %12 : vector<1x8x256xf32> to vector<8x256xf32>
    %14 = arith.mulf %10, %13 : vector<8x256xf32>
    %15 = arith.addf %14, %11 : vector<8x256xf32>
    %c0_7 = arith.constant 0 : index
    %c0_8 = arith.constant 0 : index
    %c0_9 = arith.constant 0 : index
    %16 = vector.load %arg5[%c0_7, %c0_8, %c0_9] : memref<2x8x256xf32, #tpu.memory_space<vmem>>, vector<1x8x256xf32>
    %17 = vector.shape_cast %16 : vector<1x8x256xf32> to vector<8x256xf32>
    %18 = vector.shape_cast %15 : vector<8x256xf32> to vector<1x8x256xf32>
    tpu.vector_store %arg5[%c0_7, %c0_8, %c0_9], %18 {strides = array<i32>} : memref<2x8x256xf32, #tpu.memory_space<vmem>>, vector<1x8x256xf32>,
    %c1 = arith.constant 1 : index
    %c0_10 = arith.constant 0 : index
    %c0_11 = arith.constant 0 : index
    %19 = vector.load %arg2[%c1, %c0_10, %c0_11] : memref<2x1x256xi32, #tpu.memory_space<vmem>>, vector<1x1x256xi32>
    %20 = vector.shape_cast %19 : vector<1x1x256xi32> to vector<1x256xi32>
    %21 = vector.broadcast %20 : vector<1x256xi32> to vector<256x256xi32>
    %22 = arith.cmpi eq, %1, %21 : vector<256x256xi32>
    %23 = arith.extui %22 : vector<256x256xi1> to vector<256x256xi32>
    %24 = arith.sitofp %23 : vector<256x256xi32> to vector<256x256xf32>
    %25 = arith.truncf %24 : vector<256x256xf32> to vector<256x256xbf16>
    %cst_12 = arith.constant dense<0.000000e+00> : vector<16x256xf32>
    %26 = tpu.matmul %0, %25, %cst_12 {dimension_numbers = #tpu.dot_dimension_numbers<[1], [0], [0], [1], [0, 0, 1, 1], [], []>} : vector<16x256xbf16>, vector<256x256xbf16>, vector<16x256xf32> -> vector<16x256xf32>
    %27 = vector.extract_strided_slice %26 {offsets = [0, 0], sizes = [8, 256], strides = [1, 1]} : vector<16x256xf32> to vector<8x256xf32>
    %28 = vector.extract_strided_slice %26 {offsets = [8, 0], sizes = [8, 256], strides = [1, 1]} : vector<16x256xf32> to vector<8x256xf32>
    %c1_13 = arith.constant 1 : index
    %c0_14 = arith.constant 0 : index
    %c0_15 = arith.constant 0 : index
    %29 = vector.load %arg3[%c1_13, %c0_14, %c0_15] : memref<2x8x256xf32, #tpu.memory_space<vmem>>, vector<1x8x256xf32>
    %30 = vector.shape_cast %29 : vector<1x8x256xf32> to vector<8x256xf32>
    %31 = arith.mulf %27, %30 : vector<8x256xf32>
    %32 = arith.addf %31, %28 : vector<8x256xf32>
    %c1_16 = arith.constant 1 : index
    %c0_17 = arith.constant 0 : index
    %c0_18 = arith.constant 0 : index
    %33 = vector.load %arg5[%c1_16, %c0_17, %c0_18] : memref<2x8x256xf32, #tpu.memory_space<vmem>>, vector<1x8x256xf32>
    %34 = vector.shape_cast %33 : vector<1x8x256xf32> to vector<8x256xf32>
    %35 = vector.shape_cast %32 : vector<8x256xf32> to vector<1x8x256xf32>
    tpu.vector_store %arg5[%c1_16, %c0_17, %c0_18], %35 {strides = array<i32>} : memref<2x8x256xf32, #tpu.memory_space<vmem>>, vector<1x8x256xf32>,
    return
  }
  func.func @transform_0(%arg0: i32, %arg1: i32) -> (i32, i32, i32) {
    %c0_i32 = arith.constant 0 : i32
    %c0_i32_0 = arith.constant 0 : i32
    return %arg0, %c0_i32, %arg1 : i32, i32, i32
  }
  func.func @transform_1(%arg0: i32, %arg1: i32) -> (i32, i32, i32) {
    %c0_i32 = arith.constant 0 : i32
    %c0_i32_0 = arith.constant 0 : i32
    return %arg0, %c0_i32, %arg1 : i32, i32, i32
  }
  func.func @transform_2(%arg0: i32, %arg1: i32) -> (i32, i32) {
    %c0_i32 = arith.constant 0 : i32
    %c0_i32_0 = arith.constant 0 : i32
    %c0_i32_1 = arith.constant 0 : i32
    return %c0_i32, %c0_i32_0 : i32, i32
  }
  func.func @transform_3(%arg0: i32, %arg1: i32) -> (i32, i32, i32) {
    %c0_i32 = arith.constant 0 : i32
    %c0_i32_0 = arith.constant 0 : i32
    return %arg0, %c0_i32, %arg1 : i32, i32, i32
  }
}

</mosaic_0001>

<llo_original>
// kernel: tpu_custom_call.1
$region0: #{tpu_custom_call.1}
  #allocation0 [shape = 'u32[]', space=smem, size = 0x4, offset = 0x4, fixed_abs, tag = 'smem constant byte address 0x4 - core index']
  #allocation1 [shape = 'u32[144,128]{1,0:T(1,128)}', space=vmem, size = 0x12000, scoped, tag = 'internal scratch']
  %s0 = inlined_call_operand.hbm [shape: s32[2,1,256], index: 0, kind: input, shape index: {}]
  %s1 = inlined_call_operand.hbm [shape: f32[2,8,256], index: 1, kind: input, shape index: {}]
  %s2 = inlined_call_operand.hbm [shape: bf16[16,256], index: 2, kind: input, shape index: {}]
  %s3 = inlined_call_operand.hbm [shape: f32[2,8,256], index: 3, kind: output, shape index: {}]
  %s4 = sld [smem:[#allocation0]]
  $region34: #{tpu_custom_call.1} parent=0
    _
  %s6 = ssub.s32 1, %s4
  %s7 = scalar_select 0, %s6, %s4
  $region1: #{tpu_custom_call.1} parent=0
    #allocation2 [shape = 'u8[2048]{0}', space=vmem, size = 0x800, scoped, tag = 'input window, operand 0, single buffered']
    #allocation3 [shape = 's32[1]{0}', space=sflag, size = 0x4, scoped, tag = 'scoped memory for tpu_custom_call.1']
    #allocation4 [shape = 's32[1]{0}', space=sflag, size = 0x4, scoped, tag = 'scoped memory for tpu_custom_call.1']
    #allocation5 [shape = 'u8[16384]{0}', space=vmem, size = 0x4000, scoped, tag = 'input window, operand 1, single buffered']
    #allocation6 [shape = 's32[1]{0}', space=sflag, size = 0x4, scoped, tag = 'scoped memory for tpu_custom_call.1']
    #allocation7 [shape = 'u8[8192]{0}', space=vmem, size = 0x2000, scoped, tag = 'input window, operand 2, single buffered']
    #allocation8 [shape = 'u8[16384]{0}', space=vmem, size = 0x4000, scoped, tag = 'output window, operand 0, single buffered']
    %8 = vsyncpa [#allocation3], 0
    %9 = vsyncpa [#allocation6], 0
    %10 = vsyncpa [#allocation4], 0
    // Predicated region
    $region2: #{tpu_custom_call.1} parent=1 // pred_check
      _
    $region3: #{tpu_custom_call.1} parent=1 // pred_check_branch
      %12 = sbr.rel (0) target = $region5
    $region4: #{tpu_custom_call.1} parent=1 // pred_region
      %s14 = ssub.s32 64, 64
      %15 = vsyncadd [#allocation3], %s14
      %s16 = sshll.u32 [#allocation2], 4
      %s17 = int_to_ptr.vmem [resolvable:$true] %s16
      %22 = dma.hbm_to_vmem [thread:$0]  %s0, 64, %s17, [#allocation3], 32, 32, 2
    $region5: #{tpu_custom_call.1} parent=1 // pred_fallthru
      _
    // Predicated region
    $region6: #{tpu_custom_call.1} parent=1 // pred_check
      _
    $region7: #{tpu_custom_call.1} parent=1 // pred_check_branch
      %24 = sbr.rel (0) target = $region9
    $region8: #{tpu_custom_call.1} parent=1 // pred_region
      %s26 = ssub.s32 512, 512
      %27 = vsyncadd [#allocation6], %s26
      %s28 = sshll.u32 [#allocation5], 4
      %s29 = int_to_ptr.vmem [resolvable:$true] %s28
      %34 = dma.hbm_to_vmem [thread:$0]  %s1, 512, %s29, [#allocation6], 256, 256, 16
    $region9: #{tpu_custom_call.1} parent=1 // pred_fallthru
      _
    // Predicated region
    $region10: #{tpu_custom_call.1} parent=1 // pred_check
      _
    $region11: #{tpu_custom_call.1} parent=1 // pred_check_branch
      %36 = sbr.rel (0) target = $region13
    $region12: #{tpu_custom_call.1} parent=1 // pred_region
      %s38 = ssub.s32 256, 256
      %39 = vsyncadd [#allocation6], %s38
      %s40 = sshll.u32 [#allocation7], 4
      %s41 = int_to_ptr.vmem [resolvable:$true] %s40
      %46 = dma.hbm_to_vmem [thread:$0]  %s2, 256, %s41, [#allocation6], 128, 128, 8
    $region13: #{tpu_custom_call.1} parent=1 // pred_fallthru
      _
    // Predicated region
    $region14: #{tpu_custom_call.1} parent=1 // pred_check
      _
    $region15: #{tpu_custom_call.1} parent=1 // pred_check_branch
      %48 = sbr.rel (0) target = $region17
    $region16: #{tpu_custom_call.1} parent=1 // pred_region
      %49 = dma.done [#allocation3], 64
    $region17: #{tpu_custom_call.1} parent=1 // pred_fallthru
      _
    // Predicated region
    $region18: #{tpu_custom_call.1} parent=1 // pred_check
      _
    $region19: #{tpu_custom_call.1} parent=1 // pred_check_branch
      %51 = sbr.rel (0) target = $region21
    $region20: #{tpu_custom_call.1} parent=1 // pred_region
      %52 = dma.done [#allocation6], 512
    $region21: #{tpu_custom_call.1} parent=1 // pred_fallthru
      _
    // Predicated region
    $region22: #{tpu_custom_call.1} parent=1 // pred_check
      _
    $region23: #{tpu_custom_call.1} parent=1 // pred_check_branch
      %54 = sbr.rel (0) target = $region25
    $region24: #{tpu_custom_call.1} parent=1 // pred_region
      %55 = dma.done [#allocation6], 256
    $region25: #{tpu_custom_call.1} parent=1 // pred_fallthru
      _
    %v56 = vld [vmem:[#allocation7] sm:$0xff]
    %v57 = vld [vmem:[#allocation7 + $0x8] sm:$0xff]
    %v58 = vlaneseq
    %v59 = vshrl.u32 %v58, 7
    %v60 = vadd.s32 %v59, 8
    %v61 = vadd.s32 %v59, 16
    %v62 = vadd.s32 %v59, 24
    %v63 = vadd.s32 %v59, 32
    %v64 = vadd.s32 %v59, 40
    %v65 = vadd.s32 %v59, 48
    %v66 = vadd.s32 %v59, 56
    %v67 = vadd.s32 %v59, 64
    %v68 = vadd.s32 %v59, 72
    %v69 = vadd.s32 %v59, 80
    %v70 = vadd.s32 %v59, 88
    %v71 = vadd.s32 %v59, 96
    %v72 = vadd.s32 %v59, 104
    %v73 = vadd.s32 %v59, 112
    %v74 = vadd.s32 %v59, 120
    %v75 = vadd.s32 %v59, 128
    %v76 = vadd.s32 %v59, 136
    %v77 = vadd.s32 %v59, 144
    %v78 = vadd.s32 %v59, 152
    %v79 = vadd.s32 %v59, 160
    %v80 = vadd.s32 %v59, 168
    %v81 = vadd.s32 %v59, 176
    %v82 = vadd.s32 %v59, 184
    %v83 = vadd.s32 %v59, 192
    %v84 = vadd.s32 %v59, 200
    %v85 = vadd.s32 %v59, 208
    %v86 = vadd.s32 %v59, 216
    %v87 = vadd.s32 %v59, 224
    %v88 = vadd.s32 %v59, 232
    %v89 = vadd.s32 %v59, 240
    %v90 = vadd.s32 %v59, 248
    %v91 = vld [vmem:[#allocation2] sm:$0x3]
    %v92 = vlaneseq
    %v93 = vshrl.u32 %v92, 7
    %v94 = vsub.s32 0, %v93
    %v95 = vrot.slane %v91, %v94
    %v96 = vlaneseq
    %v97 = vshrl.u32 %v96, 7
    %v98 = vsub.s32 1, %v97
    %v99 = vrot.slane %v91, %v98
    %vm100 = vcmp.eq.s32.totalorder %v59, %v95
    %vm101 = vcmp.eq.s32.totalorder %v59, %v99
    %vm102 = vcmp.eq.s32.totalorder %v60, %v95
    %vm103 = vcmp.eq.s32.totalorder %v60, %v99
    %vm104 = vcmp.eq.s32.totalorder %v61, %v95
    %vm105 = vcmp.eq.s32.totalorder %v61, %v99
    %vm106 = vcmp.eq.s32.totalorder %v62, %v95
    %vm107 = vcmp.eq.s32.totalorder %v62, %v99
    %vm108 = vcmp.eq.s32.totalorder %v63, %v95
    %vm109 = vcmp.eq.s32.totalorder %v63, %v99
    %vm110 = vcmp.eq.s32.totalorder %v64, %v95
    %vm111 = vcmp.eq.s32.totalorder %v64, %v99
    %vm112 = vcmp.eq.s32.totalorder %v65, %v95
    %vm113 = vcmp.eq.s32.totalorder %v65, %v99
    %vm114 = vcmp.eq.s32.totalorder %v66, %v95
    %vm115 = vcmp.eq.s32.totalorder %v66, %v99
    %vm116 = vcmp.eq.s32.totalorder %v67, %v95
    %vm117 = vcmp.eq.s32.totalorder %v67, %v99
    %vm118 = vcmp.eq.s32.totalorder %v68, %v95
    %vm119 = vcmp.eq.s32.totalorder %v68, %v99
    %vm120 = vcmp.eq.s32.totalorder %v69, %v95
    %vm121 = vcmp.eq.s32.totalorder %v69, %v99
    %vm122 = vcmp.eq.s32.totalorder %v70, %v95
    %vm123 = vcmp.eq.s32.totalorder %v70, %v99
    %vm124 = vcmp.eq.s32.totalorder %v71, %v95
    %vm125 = vcmp.eq.s32.totalorder %v71, %v99
    %vm126 = vcmp.eq.s32.totalorder %v72, %v95
    %vm127 = vcmp.eq.s32.totalorder %v72, %v99
    %vm128 = vcmp.eq.s32.totalorder %v73, %v95
    %vm129 = vcmp.eq.s32.totalorder %v73, %v99
    %vm130 = vcmp.eq.s32.totalorder %v74, %v95
    %vm131 = vcmp.eq.s32.totalorder %v74, %v99
    %vm132 = vcmp.eq.s32.totalorder %v75, %v95
    %vm133 = vcmp.eq.s32.totalorder %v75, %v99
    %vm134 = vcmp.eq.s32.totalorder %v76, %v95
    %vm135 = vcmp.eq.s32.totalorder %v76, %v99
    %vm136 = vcmp.eq.s32.totalorder %v77, %v95
    %vm137 = vcmp.eq.s32.totalorder %v77, %v99
    %vm138 = vcmp.eq.s32.totalorder %v78, %v95
    %vm139 = vcmp.eq.s32.totalorder %v78, %v99
    %vm140 = vcmp.eq.s32.totalorder %v79, %v95
    %vm141 = vcmp.eq.s32.totalorder %v79, %v99
    %vm142 = vcmp.eq.s32.totalorder %v80, %v95
    %vm143 = vcmp.eq.s32.totalorder %v80, %v99
    %vm144 = vcmp.eq.s32.totalorder %v81, %v95
    %vm145 = vcmp.eq.s32.totalorder %v81, %v99
    %vm146 = vcmp.eq.s32.totalorder %v82, %v95
    %vm147 = vcmp.eq.s32.totalorder %v82, %v99
    %vm148 = vcmp.eq.s32.totalorder %v83, %v95
    %vm149 = vcmp.eq.s32.totalorder %v83, %v99
    %vm150 = vcmp.eq.s32.totalorder %v84, %v95
    %vm151 = vcmp.eq.s32.totalorder %v84, %v99
    %vm152 = vcmp.eq.s32.totalorder %v85, %v95
    %vm153 = vcmp.eq.s32.totalorder %v85, %v99
    %vm154 = vcmp.eq.s32.totalorder %v86, %v95
    %vm155 = vcmp.eq.s32.totalorder %v86, %v99
    %vm156 = vcmp.eq.s32.totalorder %v87, %v95
    %vm157 = vcmp.eq.s32.totalorder %v87, %v99
    %vm158 = vcmp.eq.s32.totalorder %v88, %v95
    %vm159 = vcmp.eq.s32.totalorder %v88, %v99
    %vm160 = vcmp.eq.s32.totalorder %v89, %v95
    %vm161 = vcmp.eq.s32.totalorder %v89, %v99
    %vm162 = vcmp.eq.s32.totalorder %v90, %v95
    %vm163 = vcmp.eq.s32.totalorder %v90, %v99
    %v164 = vsel %vm100, 1, 0
    %v165 = vsel %vm101, 1, 0
    %v166 = vsel %vm102, 1, 0
    %v167 = vsel %vm103, 1, 0
    %v168 = vsel %vm104, 1, 0
    %v169 = vsel %vm105, 1, 0
    %v170 = vsel %vm106, 1, 0
    %v171 = vsel %vm107, 1, 0
    %v172 = vsel %vm108, 1, 0
    %v173 = vsel %vm109, 1, 0
    %v174 = vsel %vm110, 1, 0
    %v175 = vsel %vm111, 1, 0
    %v176 = vsel %vm112, 1, 0
    %v177 = vsel %vm113, 1, 0
    %v178 = vsel %vm114, 1, 0
    %v179 = vsel %vm115, 1, 0
    %v180 = vsel %vm116, 1, 0
    %v181 = vsel %vm117, 1, 0
    %v182 = vsel %vm118, 1, 0
    %v183 = vsel %vm119, 1, 0
    %v184 = vsel %vm120, 1, 0
    %v185 = vsel %vm121, 1, 0
    %v186 = vsel %vm122, 1, 0
    %v187 = vsel %vm123, 1, 0
    %v188 = vsel %vm124, 1, 0
    %v189 = vsel %vm125, 1, 0
    %v190 = vsel %vm126, 1, 0
    %v191 = vsel %vm127, 1, 0
    %v192 = vsel %vm128, 1, 0
    %v193 = vsel %vm129, 1, 0
    %v194 = vsel %vm130, 1, 0
    %v195 = vsel %vm131, 1, 0
    %v196 = vsel %vm132, 1, 0
    %v197 = vsel %vm133, 1, 0
    %v198 = vsel %vm134, 1, 0
    %v199 = vsel %vm135, 1, 0
    %v200 = vsel %vm136, 1, 0
    %v201 = vsel %vm137, 1, 0
    %v202 = vsel %vm138, 1, 0
    %v203 = vsel %vm139, 1, 0
    %v204 = vsel %vm140, 1, 0
    %v205 = vsel %vm141, 1, 0
    %v206 = vsel %vm142, 1, 0
    %v207 = vsel %vm143, 1, 0
    %v208 = vsel %vm144, 1, 0
    %v209 = vsel %vm145, 1, 0
    %v210 = vsel %vm146, 1, 0
    %v211 = vsel %vm147, 1, 0
    %v212 = vsel %vm148, 1, 0
    %v213 = vsel %vm149, 1, 0
    %v214 = vsel %vm150, 1, 0
    %v215 = vsel %vm151, 1, 0
    %v216 = vsel %vm152, 1, 0
    %v217 = vsel %vm153, 1, 0
    %v218 = vsel %vm154, 1, 0
    %v219 = vsel %vm155, 1, 0
    %v220 = vsel %vm156, 1, 0
    %v221 = vsel %vm157, 1, 0
    %v222 = vsel %vm158, 1, 0
    %v223 = vsel %vm159, 1, 0
    %v224 = vsel %vm160, 1, 0
    %v225 = vsel %vm161, 1, 0
    %v226 = vsel %vm162, 1, 0
    %v227 = vsel %vm163, 1, 0
    %v228 = vcvt.s32.f32 %v164
    %v229 = vcvt.s32.f32 %v165
    %v230 = vcvt.s32.f32 %v166
    %v231 = vcvt.s32.f32 %v167
    %v232 = vcvt.s32.f32 %v168
    %v233 = vcvt.s32.f32 %v169
    %v234 = vcvt.s32.f32 %v170
    %v235 = vcvt.s32.f32 %v171
    %v236 = vcvt.s32.f32 %v172
    %v237 = vcvt.s32.f32 %v173
    %v238 = vcvt.s32.f32 %v174
    %v239 = vcvt.s32.f32 %v175
    %v240 = vcvt.s32.f32 %v176
    %v241 = vcvt.s32.f32 %v177
    %v242 = vcvt.s32.f32 %v178
    %v243 = vcvt.s32.f32 %v179
    %v244 = vcvt.s32.f32 %v180
    %v245 = vcvt.s32.f32 %v181
    %v246 = vcvt.s32.f32 %v182
    %v247 = vcvt.s32.f32 %v183
    %v248 = vcvt.s32.f32 %v184
    %v249 = vcvt.s32.f32 %v185
    %v250 = vcvt.s32.f32 %v186
    %v251 = vcvt.s32.f32 %v187
    %v252 = vcvt.s32.f32 %v188
    %v253 = vcvt.s32.f32 %v189
    %v254 = vcvt.s32.f32 %v190
    %v255 = vcvt.s32.f32 %v191
    %v256 = vcvt.s32.f32 %v192
    %v257 = vcvt.s32.f32 %v193
    %v258 = vcvt.s32.f32 %v194
    %v259 = vcvt.s32.f32 %v195
    %v260 = vcvt.s32.f32 %v196
    %v261 = vcvt.s32.f32 %v197
    %v262 = vcvt.s32.f32 %v198
    %v263 = vcvt.s32.f32 %v199
    %v264 = vcvt.s32.f32 %v200
    %v265 = vcvt.s32.f32 %v201
    %v266 = vcvt.s32.f32 %v202
    %v267 = vcvt.s32.f32 %v203
    %v268 = vcvt.s32.f32 %v204
    %v269 = vcvt.s32.f32 %v205
    %v270 = vcvt.s32.f32 %v206
    %v271 = vcvt.s32.f32 %v207
    %v272 = vcvt.s32.f32 %v208
    %v273 = vcvt.s32.f32 %v209
    %v274 = vcvt.s32.f32 %v210
    %v275 = vcvt.s32.f32 %v211
    %v276 = vcvt.s32.f32 %v212
    %v277 = vcvt.s32.f32 %v213
    %v278 = vcvt.s32.f32 %v214
    %v279 = vcvt.s32.f32 %v215
    %v280 = vcvt.s32.f32 %v216
    %v281 = vcvt.s32.f32 %v217
    %v282 = vcvt.s32.f32 %v218
    %v283 = vcvt.s32.f32 %v219
    %v284 = vcvt.s32.f32 %v220
    %v285 = vcvt.s32.f32 %v221
    %v286 = vcvt.s32.f32 %v222
    %v287 = vcvt.s32.f32 %v223
    %v288 = vcvt.s32.f32 %v224
    %v289 = vcvt.s32.f32 %v225
    %v290 = vcvt.s32.f32 %v226
    %v291 = vcvt.s32.f32 %v227
    %v292 = vpack.c.bf16 %v230, %v228
    %v293 = vpack.c.bf16 %v231, %v229
    %v294 = vpack.c.bf16 %v234, %v232
    %v295 = vpack.c.bf16 %v235, %v233
    %v296 = vpack.c.bf16 %v238, %v236
    %v297 = vpack.c.bf16 %v239, %v237
    %v298 = vpack.c.bf16 %v242, %v240
    %v299 = vpack.c.bf16 %v243, %v241
    %v300 = vpack.c.bf16 %v246, %v244
    %v301 = vpack.c.bf16 %v247, %v245
    %v302 = vpack.c.bf16 %v250, %v248
    %v303 = vpack.c.bf16 %v251, %v249
    %v304 = vpack.c.bf16 %v254, %v252
    %v305 = vpack.c.bf16 %v255, %v253
    %v306 = vpack.c.bf16 %v258, %v256
    %v307 = vpack.c.bf16 %v259, %v257
    %v308 = vpack.c.bf16 %v262, %v260
    %v309 = vpack.c.bf16 %v263, %v261
    %v310 = vpack.c.bf16 %v266, %v264
    %v311 = vpack.c.bf16 %v267, %v265
    %v312 = vpack.c.bf16 %v270, %v268
    %v313 = vpack.c.bf16 %v271, %v269
    %v314 = vpack.c.bf16 %v274, %v272
    %v315 = vpack.c.bf16 %v275, %v273
    %v316 = vpack.c.bf16 %v278, %v276
    %v317 = vpack.c.bf16 %v279, %v277
    %v318 = vpack.c.bf16 %v282, %v280
    %v319 = vpack.c.bf16 %v283, %v281
    %v320 = vpack.c.bf16 %v286, %v284
    %v321 = vpack.c.bf16 %v287, %v285
    %v322 = vpack.c.bf16 %v290, %v288
    %v323 = vpack.c.bf16 %v291, %v289
    %v326 = vunpack.c.l.b16 %v56
    %v327 = vunpack.c.h.b16 %v56
    %v328 = vunpack.c.l.b16 %v57
    %v329 = vunpack.c.h.b16 %v57
    %v330 = vpack.c.b16 %v328, %v326
    %v331 = vpack.c.b16 %v329, %v327
    %334 = vmatprep.subr.bf16.mxu0 %v293
    %335 = vmatpush1.bf16.msra.mxu0 %v292
    %336 = vmatprep.subr.bf16.mxu0 %v295
    %337 = vmatpush1.bf16.msra.mxu0 %v294
    %338 = vmatprep.subr.bf16.mxu0 %v297
    %339 = vmatpush1.bf16.msra.mxu0 %v296
    %340 = vmatprep.subr.bf16.mxu0 %v299
    %341 = vmatpush1.bf16.msra.mxu0 %v298
    %342 = vmatprep.subr.bf16.mxu0 %v301
    %343 = vmatpush1.bf16.msra.mxu0 %v300
    %344 = vmatprep.subr.bf16.mxu0 %v303
    %345 = vmatpush1.bf16.msra.mxu0 %v302
    %346 = vmatprep.subr.bf16.mxu0 %v305
    %347 = vmatpush1.bf16.msra.mxu0 %v304
    %348 = vmatprep.subr.bf16.mxu0 %v307
    %349 = vmatpush1.bf16.msra.mxu0 %v306
    %350 = vmatprep.subr.bf16.mxu0 %v309
    %351 = vmatpush1.bf16.msra.mxu0 %v308
    %352 = vmatprep.subr.bf16.mxu0 %v311
    %353 = vmatpush1.bf16.msra.mxu0 %v310
    %354 = vmatprep.subr.bf16.mxu0 %v313
    %355 = vmatpush1.bf16.msra.mxu0 %v312
    %356 = vmatprep.subr.bf16.mxu0 %v315
    %357 = vmatpush1.bf16.msra.mxu0 %v314
    %358 = vmatprep.subr.bf16.mxu0 %v317
    %359 = vmatpush1.bf16.msra.mxu0 %v316
    %360 = vmatprep.subr.bf16.mxu0 %v319
    %361 = vmatpush1.bf16.msra.mxu0 %v318
    %362 = vmatprep.subr.bf16.mxu0 %v321
    %363 = vmatpush1.bf16.msra.mxu0 %v320
    %364 = vmatprep.subr.bf16.mxu0 %v323
    %365 = vmatpush1.bf16.msra.mxu0 %v322
    %366 = vmatprep.mubr.bf16.mxu0 %v331
    %367 = vmatmul.mubr.bf16.gmra.mrb[0].mxu0 %v330
    %v368 = vpop.f32.mrb[0].mxu0
    %v369 = vadd.f32 0.0, %v368
    %v370 = vpop.f32.mrb[0].mxu0
    %v371 = vadd.f32 0.0, %v370
    %v372 = vpop.f32.mrb[0].mxu0
    %v373 = vadd.f32 0.0, %v372
    %v374 = vpop.f32.mrb[0].mxu0
    %v375 = vadd.f32 0.0, %v374
    %376 = vdwg.mxu0
    %v377 = vld [vmem:[#allocation5] sm:$0xff]
    %v378 = vld [vmem:[#allocation5 + $0x8] sm:$0xff]
    %v379 = vmul.f32 %v369, %v377
    %v380 = vmul.f32 %v371, %v378
    %v381 = vadd.f32 %v379, %v373
    %v382 = vadd.f32 %v380, %v375
    %383 = vst [vmem:[#allocation8] sm:$0xff] %v381
    %384 = vst [vmem:[#allocation8 + $0x8] sm:$0xff] %v382
    %s385 = scalar_lea.vmem [#allocation2], 2
    %v386 = vld [vmem:[%s385] sm:$0x3]
    %v387 = vlaneseq
    %v388 = vshrl.u32 %v387, 7
    %v389 = vsub.s32 0, %v388
    %v390 = vrot.slane %v386, %v389
    %v391 = vlaneseq
    %v392 = vshrl.u32 %v391, 7
    %v393 = vsub.s32 1, %v392
    %v394 = vrot.slane %v386, %v393
    %vm395 = vcmp.eq.s32.totalorder %v59, %v390
    %vm396 = vcmp.eq.s32.totalorder %v59, %v394
    %vm397 = vcmp.eq.s32.totalorder %v60, %v390
    %vm398 = vcmp.eq.s32.totalorder %v60, %v394
    %vm399 = vcmp.eq.s32.totalorder %v61, %v390
    %vm400 = vcmp.eq.s32.totalorder %v61, %v394
    %vm401 = vcmp.eq.s32.totalorder %v62, %v390
    %vm402 = vcmp.eq.s32.totalorder %v62, %v394
    %vm403 = vcmp.eq.s32.totalorder %v63, %v390
    %vm404 = vcmp.eq.s32.totalorder %v63, %v394
    %vm405 = vcmp.eq.s32.totalorder %v64, %v390
    %vm406 = vcmp.eq.s32.totalorder %v64, %v394
    %vm407 = vcmp.eq.s32.totalorder %v65, %v390
    %vm408 = vcmp.eq.s32.totalorder %v65, %v394
    %vm409 = vcmp.eq.s32.totalorder %v66, %v390
    %vm410 = vcmp.eq.s32.totalorder %v66, %v394
    %vm411 = vcmp.eq.s32.totalorder %v67, %v390
    %vm412 = vcmp.eq.s32.totalorder %v67, %v394
    %vm413 = vcmp.eq.s32.totalorder %v68, %v390
    %vm414 = vcmp.eq.s32.totalorder %v68, %v394
    %vm415 = vcmp.eq.s32.totalorder %v69, %v390
    %vm416 = vcmp.eq.s32.totalorder %v69, %v394
    %vm417 = vcmp.eq.s32.totalorder %v70, %v390
    %vm418 = vcmp.eq.s32.totalorder %v70, %v394
    %vm419 = vcmp.eq.s32.totalorder %v71, %v390
    %vm420 = vcmp.eq.s32.totalorder %v71, %v394
    %vm421 = vcmp.eq.s32.totalorder %v72, %v390
    %vm422 = vcmp.eq.s32.totalorder %v72, %v394
    %vm423 = vcmp.eq.s32.totalorder %v73, %v390
    %vm424 = vcmp.eq.s32.totalorder %v73, %v394
    %vm425 = vcmp.eq.s32.totalorder %v74, %v390
    %vm426 = vcmp.eq.s32.totalorder %v74, %v394
    %vm427 = vcmp.eq.s32.totalorder %v75, %v390
    %vm428 = vcmp.eq.s32.totalorder %v75, %v394
    %vm429 = vcmp.eq.s32.totalorder %v76, %v390
    %vm430 = vcmp.eq.s32.totalorder %v76, %v394
    %vm431 = vcmp.eq.s32.totalorder %v77, %v390
    %vm432 = vcmp.eq.s32.totalorder %v77, %v394
    %vm433 = vcmp.eq.s32.totalorder %v78, %v390
    %vm434 = vcmp.eq.s32.totalorder %v78, %v394
    %vm435 = vcmp.eq.s32.totalorder %v79, %v390
    %vm436 = vcmp.eq.s32.totalorder %v79, %v394
    %vm437 = vcmp.eq.s32.totalorder %v80, %v390
    %vm438 = vcmp.eq.s32.totalorder %v80, %v394
    %vm439 = vcmp.eq.s32.totalorder %v81, %v390
    %vm440 = vcmp.eq.s32.totalorder %v81, %v394
    %vm441 = vcmp.eq.s32.totalorder %v82, %v390
    %vm442 = vcmp.eq.s32.totalorder %v82, %v394
    %vm443 = vcmp.eq.s32.totalorder %v83, %v390
    %vm444 = vcmp.eq.s32.totalorder %v83, %v394
    %vm445 = vcmp.eq.s32.totalorder %v84, %v390
    %vm446 = vcmp.eq.s32.totalorder %v84, %v394
    %vm447 = vcmp.eq.s32.totalorder %v85, %v390
    %vm448 = vcmp.eq.s32.totalorder %v85, %v394
    %vm449 = vcmp.eq.s32.totalorder %v86, %v390
    %vm450 = vcmp.eq.s32.totalorder %v86, %v394
    %vm451 = vcmp.eq.s32.totalorder %v87, %v390
    %vm452 = vcmp.eq.s32.totalorder %v87, %v394
    %vm453 = vcmp.eq.s32.totalorder %v88, %v390
    %vm454 = vcmp.eq.s32.totalorder %v88, %v394
    %vm455 = vcmp.eq.s32.totalorder %v89, %v390
    %vm456 = vcmp.eq.s32.totalorder %v89, %v394
    %vm457 = vcmp.eq.s32.totalorder %v90, %v390
    %vm458 = vcmp.eq.s32.totalorder %v90, %v394
    %v459 = vsel %vm395, 1, 0
    %v460 = vsel %vm396, 1, 0
    %v461 = vsel %vm397, 1, 0
    %v462 = vsel %vm398, 1, 0
    %v463 = vsel %vm399, 1, 0
    %v464 = vsel %vm400, 1, 0
    %v465 = vsel %vm401, 1, 0
    %v466 = vsel %vm402, 1, 0
    %v467 = vsel %vm403, 1, 0
    %v468 = vsel %vm404, 1, 0
    %v469 = vsel %vm405, 1, 0
    %v470 = vsel %vm406, 1, 0
    %v471 = vsel %vm407, 1, 0
    %v472 = vsel %vm408, 1, 0
    %v473 = vsel %vm409, 1, 0
    %v474 = vsel %vm410, 1, 0
    %v475 = vsel %vm411, 1, 0
    %v476 = vsel %vm412, 1, 0
    %v477 = vsel %vm413, 1, 0
    %v478 = vsel %vm414, 1, 0
    %v479 = vsel %vm415, 1, 0
    %v480 = vsel %vm416, 1, 0
    %v481 = vsel %vm417, 1, 0
    %v482 = vsel %vm418, 1, 0
    %v483 = vsel %vm419, 1, 0
    %v484 = vsel %vm420, 1, 0
    %v485 = vsel %vm421, 1, 0
    %v486 = vsel %vm422, 1, 0
    %v487 = vsel %vm423, 1, 0
    %v488 = vsel %vm424, 1, 0
    %v489 = vsel %vm425, 1, 0
    %v490 = vsel %vm426, 1, 0
    %v491 = vsel %vm427, 1, 0
    %v492 = vsel %vm428, 1, 0
    %v493 = vsel %vm429, 1, 0
    %v494 = vsel %vm430, 1, 0
    %v495 = vsel %vm431, 1, 0
    %v496 = vsel %vm432, 1, 0
    %v497 = vsel %vm433, 1, 0
    %v498 = vsel %vm434, 1, 0
    %v499 = vsel %vm435, 1, 0
    %v500 = vsel %vm436, 1, 0
    %v501 = vsel %vm437, 1, 0
    %v502 = vsel %vm438, 1, 0
    %v503 = vsel %vm439, 1, 0
    %v504 = vsel %vm440, 1, 0
    %v505 = vsel %vm441, 1, 0
    %v506 = vsel %vm442, 1, 0
    %v507 = vsel %vm443, 1, 0
    %v508 = vsel %vm444, 1, 0
    %v509 = vsel %vm445, 1, 0
    %v510 = vsel %vm446, 1, 0
    %v511 = vsel %vm447, 1, 0
    %v512 = vsel %vm448, 1, 0
    %v513 = vsel %vm449, 1, 0
    %v514 = vsel %vm450, 1, 0
    %v515 = vsel %vm451, 1, 0
    %v516 = vsel %vm452, 1, 0
    %v517 = vsel %vm453, 1, 0
    %v518 = vsel %vm454, 1, 0
    %v519 = vsel %vm455, 1, 0
    %v520 = vsel %vm456, 1, 0
    %v521 = vsel %vm457, 1, 0
    %v522 = vsel %vm458, 1, 0
    %v523 = vcvt.s32.f32 %v459
    %v524 = vcvt.s32.f32 %v460
    %v525 = vcvt.s32.f32 %v461
    %v526 = vcvt.s32.f32 %v462
    %v527 = vcvt.s32.f32 %v463
    %v528 = vcvt.s32.f32 %v464
    %v529 = vcvt.s32.f32 %v465
    %v530 = vcvt.s32.f32 %v466
    %v531 = vcvt.s32.f32 %v467
    %v532 = vcvt.s32.f32 %v468
    %v533 = vcvt.s32.f32 %v469
    %v534 = vcvt.s32.f32 %v470
    %v535 = vcvt.s32.f32 %v471
    %v536 = vcvt.s32.f32 %v472
    %v537 = vcvt.s32.f32 %v473
    %v538 = vcvt.s32.f32 %v474
    %v539 = vcvt.s32.f32 %v475
    %v540 = vcvt.s32.f32 %v476
    %v541 = vcvt.s32.f32 %v477
    %v542 = vcvt.s32.f32 %v478
    %v543 = vcvt.s32.f32 %v479
    %v544 = vcvt.s32.f32 %v480
    %v545 = vcvt.s32.f32 %v481
    %v546 = vcvt.s32.f32 %v482
    %v547 = vcvt.s32.f32 %v483
    %v548 = vcvt.s32.f32 %v484
    %v549 = vcvt.s32.f32 %v485
    %v550 = vcvt.s32.f32 %v486
    %v551 = vcvt.s32.f32 %v487
    %v552 = vcvt.s32.f32 %v488
    %v553 = vcvt.s32.f32 %v489
    %v554 = vcvt.s32.f32 %v490
    %v555 = vcvt.s32.f32 %v491
    %v556 = vcvt.s32.f32 %v492
    %v557 = vcvt.s32.f32 %v493
    %v558 = vcvt.s32.f32 %v494
    %v559 = vcvt.s32.f32 %v495
    %v560 = vcvt.s32.f32 %v496
    %v561 = vcvt.s32.f32 %v497
    %v562 = vcvt.s32.f32 %v498
    %v563 = vcvt.s32.f32 %v499
    %v564 = vcvt.s32.f32 %v500
    %v565 = vcvt.s32.f32 %v501
    %v566 = vcvt.s32.f32 %v502
    %v567 = vcvt.s32.f32 %v503
    %v568 = vcvt.s32.f32 %v504
    %v569 = vcvt.s32.f32 %v505
    %v570 = vcvt.s32.f32 %v506
    %v571 = vcvt.s32.f32 %v507
    %v572 = vcvt.s32.f32 %v508
    %v573 = vcvt.s32.f32 %v509
    %v574 = vcvt.s32.f32 %v510
    %v575 = vcvt.s32.f32 %v511
    %v576 = vcvt.s32.f32 %v512
    %v577 = vcvt.s32.f32 %v513
    %v578 = vcvt.s32.f32 %v514
    %v579 = vcvt.s32.f32 %v515
    %v580 = vcvt.s32.f32 %v516
    %v581 = vcvt.s32.f32 %v517
    %v582 = vcvt.s32.f32 %v518
    %v583 = vcvt.s32.f32 %v519
    %v584 = vcvt.s32.f32 %v520
    %v585 = vcvt.s32.f32 %v521
    %v586 = vcvt.s32.f32 %v522
    %v587 = vpack.c.bf16 %v525, %v523
    %v588 = vpack.c.bf16 %v526, %v524
    %v589 = vpack.c.bf16 %v529, %v527
    %v590 = vpack.c.bf16 %v530, %v528
    %v591 = vpack.c.bf16 %v533, %v531
    %v592 = vpack.c.bf16 %v534, %v532
    %v593 = vpack.c.bf16 %v537, %v535
    %v594 = vpack.c.bf16 %v538, %v536
    %v595 = vpack.c.bf16 %v541, %v539
    %v596 = vpack.c.bf16 %v542, %v540
    %v597 = vpack.c.bf16 %v545, %v543
    %v598 = vpack.c.bf16 %v546, %v544
    %v599 = vpack.c.bf16 %v549, %v547
    %v600 = vpack.c.bf16 %v550, %v548
    %v601 = vpack.c.bf16 %v553, %v551
    %v602 = vpack.c.bf16 %v554, %v552
    %v603 = vpack.c.bf16 %v557, %v555
    %v604 = vpack.c.bf16 %v558, %v556
    %v605 = vpack.c.bf16 %v561, %v559
    %v606 = vpack.c.bf16 %v562, %v560
    %v607 = vpack.c.bf16 %v565, %v563
    %v608 = vpack.c.bf16 %v566, %v564
    %v609 = vpack.c.bf16 %v569, %v567
    %v610 = vpack.c.bf16 %v570, %v568
    %v611 = vpack.c.bf16 %v573, %v571
    %v612 = vpack.c.bf16 %v574, %v572
    %v613 = vpack.c.bf16 %v577, %v575
    %v614 = vpack.c.bf16 %v578, %v576
    %v615 = vpack.c.bf16 %v581, %v579
    %v616 = vpack.c.bf16 %v582, %v580
    %v617 = vpack.c.bf16 %v585, %v583
    %v618 = vpack.c.bf16 %v586, %v584
    %619 = vmatprep.subr.bf16.mxu0 %v588
    %620 = vmatpush1.bf16.msra.mxu0 %v587
    %621 = vmatprep.subr.bf16.mxu0 %v590
    %622 = vmatpush1.bf16.msra.mxu0 %v589
    %623 = vmatprep.subr.bf16.mxu0 %v592
    %624 = vmatpush1.bf16.msra.mxu0 %v591
    %625 = vmatprep.subr.bf16.mxu0 %v594
    %626 = vmatpush1.bf16.msra.mxu0 %v593
    %627 = vmatprep.subr.bf16.mxu0 %v596
    %628 = vmatpush1.bf16.msra.mxu0 %v595
    %629 = vmatprep.subr.bf16.mxu0 %v598
    %630 = vmatpush1.bf16.msra.mxu0 %v597
    %631 = vmatprep.subr.bf16.mxu0 %v600
    %632 = vmatpush1.bf16.msra.mxu0 %v599
    %633 = vmatprep.subr.bf16.mxu0 %v602
    %634 = vmatpush1.bf16.msra.mxu0 %v601
    %635 = vmatprep.subr.bf16.mxu0 %v604
    %636 = vmatpush1.bf16.msra.mxu0 %v603
    %637 = vmatprep.subr.bf16.mxu0 %v606
    %638 = vmatpush1.bf16.msra.mxu0 %v605
    %639 = vmatprep.subr.bf16.mxu0 %v608
    %640 = vmatpush1.bf16.msra.mxu0 %v607
    %641 = vmatprep.subr.bf16.mxu0 %v610
    %642 = vmatpush1.bf16.msra.mxu0 %v609
    %643 = vmatprep.subr.bf16.mxu0 %v612
    %644 = vmatpush1.bf16.msra.mxu0 %v611
    %645 = vmatprep.subr.bf16.mxu0 %v614
    %646 = vmatpush1.bf16.msra.mxu0 %v613
    %647 = vmatprep.subr.bf16.mxu0 %v616
    %648 = vmatpush1.bf16.msra.mxu0 %v615
    %649 = vmatprep.subr.bf16.mxu0 %v618
    %650 = vmatpush1.bf16.msra.mxu0 %v617
    %651 = vmatprep.mubr.bf16.mxu0 %v331
    %652 = vmatmul.mubr.bf16.gmra.mrb[0].mxu0 %v330
    %v653 = vpop.f32.mrb[0].mxu0
    %v654 = vadd.f32 0.0, %v653
    %v655 = vpop.f32.mrb[0].mxu0
    %v656 = vadd.f32 0.0, %v655
    %v657 = vpop.f32.mrb[0].mxu0
    %v658 = vadd.f32 0.0, %v657
    %v659 = vpop.f32.mrb[0].mxu0
    %v660 = vadd.f32 0.0, %v659
    %661 = vdwg.mxu0
    %s662 = scalar_lea.vmem [#allocation5], 16
    %v663 = vld [vmem:[%s662] sm:$0xff]
    %v664 = vld [vmem:[%s662 + $0x8] sm:$0xff]
    %v665 = vmul.f32 %v654, %v663
    %v666 = vmul.f32 %v656, %v664
    %v667 = vadd.f32 %v665, %v658
    %v668 = vadd.f32 %v666, %v660
    %s669 = scalar_lea.vmem [#allocation8], 16
    %670 = vst [vmem:[%s669] sm:$0xff] %v667
    %671 = vst [vmem:[%s669 + $0x8] sm:$0xff] %v668
    // Predicated region
    $region26: #{tpu_custom_call.1} parent=1 // pred_check
      _
    $region27: #{tpu_custom_call.1} parent=1 // pred_check_branch
      %673 = sbr.rel (0) target = $region29
    $region28: #{tpu_custom_call.1} parent=1 // pred_region
      %s675 = ssub.s32 512, 512
      %676 = vsyncadd [#allocation4], %s675
      %s677 = sshll.u32 [#allocation8], 4
      %s678 = int_to_ptr.vmem [resolvable:$true] %s677
      %683 = dma.vmem_to_hbm [thread:$0]  %s678, 512, %s3, [#allocation4], 256, 256, 16
    $region29: #{tpu_custom_call.1} parent=1 // pred_fallthru
      _
    // Predicated region
    $region30: #{tpu_custom_call.1} parent=1 // pred_check
      _
    $region31: #{tpu_custom_call.1} parent=1 // pred_check_branch
      %685 = sbr.rel (0) target = $region33
    $region32: #{tpu_custom_call.1} parent=1 // pred_region
      %686 = dma.done [#allocation4], 512
    $region33: #{tpu_custom_call.1} parent=1 // pred_fallthru
      _
    %687 = vsyncpa [#allocation3], 1
    %688 = vsyncpa [#allocation6], 1
    %689 = vsyncpa [#allocation4], 1

</llo_original>
